<compile_context>
chip_gen: v7x
topology: tpu7x:2x2x1
jax: 0.10.0
libtpu: 0.0.40
codegen_flags: <defaults>
</compile_context>

<pallas_src>
import functools
import math

import jax
import jax.numpy as jnp
from jax.experimental import pallas as pl
from jax.experimental.pallas import tpu as pltpu

_INV_SQRT2 = 1.0 / math.sqrt(2.0)


def _round_up(x, m):
    return ((x + m - 1) // m) * m


# ---------------------------------------------------------------------------
# Kernel
# ---------------------------------------------------------------------------
def _mlp_kernel(x_ref, w1_ref, b1_ref, w2_ref, b2_ref, o_ref, *, activation):
    # In-kernel cast of x to the weight/MXU dtype (bf16 on the fast path).
    # Keeping x in its original dtype in HBM avoids a separate XLA cast pass
    # over x; the cast here is a cheap VPU op hidden under the MXU.
    x = x_ref[...].astype(w1_ref.dtype)                                # (TB, D_in)
    h = jnp.dot(x, w1_ref[...], preferred_element_type=jnp.float32)    # (TB, H) f32
    h = h + b1_ref[...]                                                # f32 bias
    # Exact GELU (erf-based) in f32, matching torch.nn.GELU() default.
    h = 0.5 * h * (1.0 + jax.lax.erf(h * jnp.float32(_INV_SQRT2)))
    # Layer 2: cast activations to the weight dtype for the MXU, f32 accumulate.
    y = jnp.dot(h.astype(w2_ref.dtype), w2_ref[...],
                preferred_element_type=jnp.float32)                    # (TB, D_out)
    y = y + b2_ref[...]
    if activation == "sigmoid":
        y = jax.nn.sigmoid(y)
    elif activation == "softmax":
        # Full d_out is resident in the tile, so row-wise softmax is exact.
        y = jax.nn.softmax(y, axis=-1)
    # 'identity': nothing to do.
    o_ref[...] = y.astype(o_ref.dtype)


# ---------------------------------------------------------------------------
# pallas_call construction
# ---------------------------------------------------------------------------
def _build_mlp_call(Bp, d_in, H, d_out, tb, x_dtype, w_dtype, out_dtype,
                    activation, weight_buffer_count):
    """Build the pallas_call for a padded batch of Bp rows, tile tb."""
    # Weights/biases never change across the batch grid -> single-buffer them
    # (weight_buffer_count=1) to halve their VMEM footprint (matters on v7x).
    w_kwargs = {}
    if weight_buffer_count is not None:
        w_kwargs = dict(pipeline_mode=pl.Buffered(weight_buffer_count))
    nbuf_w = weight_buffer_count if weight_buffer_count is not None else 2

    xsz = jnp.dtype(x_dtype).itemsize
    wsz = jnp.dtype(w_dtype).itemsize
    osz = jnp.dtype(out_dtype).itemsize

    # Explicit VMEM budget with headroom so larger batch tiles don't trip the
    # 16 MiB (v5e) / 32 MiB (v6e, v7x) scoped defaults.  Capped at v7x physical.
    vmem_needed = (
        nbuf_w * ((d_in * H + H * d_out) * wsz + (H + d_out) * 4)  # resident W/b
        + 2 * tb * d_in * xsz                                      # x tiles (2-buf)
        + 2 * tb * d_out * osz                                     # out tiles (2-buf)
        + tb * (H + d_out) * 4                                     # f32 h / y
        + tb * max(d_in, H) * wsz                                  # casted temps
    )
    vmem_limit = min(max(int(vmem_needed * 1.5) + (4 << 20), 32 << 20), 64 << 20)

    flops = 2 * Bp * d_in * H + 2 * Bp * H * d_out
    transcendentals = Bp * H                          # erf in the GELU
    if activation in ("sigmoid", "softmax"):
        transcendentals += Bp * d_out                 # exp in output activation
    bytes_accessed = (Bp * d_in * xsz
                      + (d_in * H + H * d_out) * wsz + (H + d_out) * 4
                      + Bp * d_out * osz)

    return pl.pallas_call(
        functools.partial(_mlp_kernel, activation=activation),
        out_shape=jax.ShapeDtypeStruct((Bp, d_out), out_dtype),
        grid_spec=pltpu.PrefetchScalarGridSpec(
            num_scalar_prefetch=0,
            grid=(Bp // tb,),
            in_specs=[
                pl.BlockSpec((tb, d_in), lambda i: (i, 0)),                 # x tile
                pl.BlockSpec((d_in, H), lambda i: (0, 0), **w_kwargs),      # W1 (resident)
                pl.BlockSpec((1, H), lambda i: (0, 0), **w_kwargs),         # b1
                pl.BlockSpec((H, d_out), lambda i: (0, 0), **w_kwargs),     # W2 (resident)
                pl.BlockSpec((1, d_out), lambda i: (0, 0), **w_kwargs),     # b2
            ],
            out_specs=pl.BlockSpec((tb, d_out), lambda i: (i, 0)),
        ),
        compiler_params=pltpu.CompilerParams(
            # Batch steps are independent -> shardable across v7x's 2 TensorCores.
            dimension_semantics=("parallel",),
            vmem_limit_bytes=vmem_limit,
        ),
        cost_estimate=pl.CostEstimate(
            flops=flops, transcendentals=transcendentals,
            bytes_accessed=bytes_accessed),
    )


def _pick_batch_tile(B, tb_max):
    """Pick the batch tile: big 128-aligned tiles, but keep >=2 grid steps on
    moderate batches so both v7x TensorCores get work."""
    tb_max = max(16, min(int(tb_max), 512))
    if B <= 128:
        # Single tile covering the whole (small) batch; multiple of 16 sublanes
        # covers both f32 (8) and bf16 (16) packing of x / out.
        return _round_up(max(B, 8), 16)
    tb_max = _round_up(tb_max, 128)
    half = _round_up((B + 1) // 2, 128)   # ensures at least 2 grid steps
    return max(128, min(tb_max, half))


# ---------------------------------------------------------------------------
# Public wrapper
# ---------------------------------------------------------------------------
def mlp_forward(x, w1, b1, w2, b2, *, tb=512, activation="identity",
                use_bf16_matmul=True, out_dtype=None):
    """x: (B, D_in); w1: (D_in, H); b1: (1, H); w2: (H, D_out); b2: (1, D_out).

    Weights are kept fully resident in VMEM (fine for the module's default
    512/1024/512 widths).  Set out_dtype=jnp.bfloat16 if downstream accepts
    bf16 (halves the output HBM writeback); default mirrors x.dtype.
    """
    # TODO(synk): add hidden/feature-dim (K) tiling with a pl.when-initialized
    # f32 accumulator (reduction axis last, 'arbitrary') for MLP widths whose
    # weights exceed VMEM (needed earliest on v7x's 64 MiB), and support >1
    # hidden layer from the hidden_dims list.
    B, d_in = x.shape
    H = w1.shape[1]
    d_out = w2.shape[1]
    out_dtype = x.dtype if out_dtype is None else out_dtype

    # Weights to the MXU dtype once per call (in real use, persist bf16 weights
    # outside the hot path).  x is NOT cast here -- the kernel casts in VMEM.
    w_dtype = jnp.bfloat16 if use_bf16_matmul else w1.dtype
    w1_c = w1.astype(w_dtype)
    w2_c = w2.astype(w_dtype)
    b1_c = b1.astype(jnp.float32)
    b2_c = b2.astype(jnp.float32)

    tb_eff = _pick_batch_tile(B, tb)
    Bp = _round_up(B, tb_eff)
    x_c = jnp.pad(x, ((0, Bp - B), (0, 0))) if Bp != B else x

    args = (x_c, w1_c, b1_c, w2_c, b2_c)
    try:
        call = _build_mlp_call(Bp, d_in, H, d_out, tb_eff, x_c.dtype, w_dtype,
                               out_dtype, activation, weight_buffer_count=1)
        y = call(*args)
    except pltpu.LoweringException:
        # pl.Buffered(1) single-buffering rejected by this Mosaic version:
        # retry with default double-buffering.  The explicit vmem_limit_bytes
        # already accounts for the doubled weight footprint in this branch;
        # genuine shape/layout bugs will still fail loudly here.
        call = _build_mlp_call(Bp, d_in, H, d_out, tb_eff, x_c.dtype, w_dtype,
                               out_dtype, activation, weight_buffer_count=None)
        y = call(*args)

    return y[:B] if Bp != B else y


# ---------------------------------------------------------------------------
# Init + references
# ---------------------------------------------------------------------------
def init_linear_params(key, fan_in, fan_out):
    """Deterministic init mimicking torch.nn.Linear: U(-1/sqrt(fan_in), +)."""
    kw, kb = jax.random.split(key)
    bound = 1.0 / math.sqrt(fan_in)
    # Stored as (in, out) so the kernel does x @ W (== x @ W_torch.T).
    w = jax.random.uniform(kw, (fan_in, fan_out), jnp.float32, -bound, bound)
    b = jax.random.uniform(kb, (1, fan_out), jnp.float32, -bound, bound)
    return w, b


def mlp_reference(x, w1, b1, w2, b2, activation="identity"):
    h = x @ w1 + b1
    h = jax.nn.gelu(h, approximate=False)   # exact GELU, like torch.nn.GELU()
    y = h @ w2 + b2
    if activation == "sigmoid":
        y = jax.nn.sigmoid(y)
    elif activation == "softmax":
        y = jax.nn.softmax(y, axis=-1)
    return y


def mlp_reference_bf16_inputs(x, w1, b1, w2, b2, activation="identity"):
    """Reference with the same bf16 rounding of matmul inputs as the kernel."""
    f32 = jnp.float32
    xb = x.astype(jnp.bfloat16).astype(f32)
    w1b = w1.astype(jnp.bfloat16).astype(f32)
    w2b = w2.astype(jnp.bfloat16).astype(f32)
    h = xb @ w1b + b1
    h = jax.nn.gelu(h, approximate=False)
    hb = h.astype(jnp.bfloat16).astype(f32)
    y = hb @ w2b + b2
    if activation == "sigmoid":
        y = jax.nn.sigmoid(y)
    elif activation == "softmax":
        y = jax.nn.softmax(y, axis=-1)
    return y


if __name__ == "__main__":
    # Small shapes consistent with MLP(input_dim=128, hidden_dims=[256], output_dim=128).
    # B=48 exercises the small-batch single-tile path; B=300 exercises padding
    # plus a multi-step ('parallel') batch grid.
    D_IN, HIDDEN, D_OUT = 128, 256, 128

    key = jax.random.PRNGKey(0)
    kx, kx2, k1, k2 = jax.random.split(key, 4)

    w1, b1 = init_linear_params(k1, D_IN, HIDDEN)
    w2, b2 = init_linear_params(k2, HIDDEN, D_OUT)

    # --- case 1: small batch, identity activation, bf16 MXU path (default) ---
    B = 48
    x = jax.random.normal(kx, (B, D_IN), jnp.float32)
    y = jax.block_until_ready(mlp_forward(x, w1, b1, w2, b2))
    assert y.shape == (B, D_OUT)
    y_ref_f32 = mlp_reference(x, w1, b1, w2, b2)
    y_ref_b16 = mlp_reference_bf16_inputs(x, w1, b1, w2, b2)
    assert jnp.allclose(y, y_ref_f32, atol=3e-2, rtol=3e-2), "bf16 path far from f32 reference"
    assert jnp.allclose(y, y_ref_b16, atol=1e-3, rtol=1e-3), "bf16 path mismatch"

    # Pure f32 path must match the exact reference tightly.
    y32 = jax.block_until_ready(mlp_forward(x, w1, b1, w2, b2, use_bf16_matmul=False))
    assert jnp.allclose(y32, y_ref_f32, atol=1e-4, rtol=1e-4), "f32 path mismatch"

    # --- case 2: larger batch (padding + multi-step grid), sigmoid output ---
    B2 = 300
    x2 = jax.random.normal(kx2, (B2, D_IN), jnp.float32)
    y2 = jax.block_until_ready(mlp_forward(x2, w1, b1, w2, b2, activation="sigmoid"))
    assert y2.shape == (B2, D_OUT)
    y2_ref = mlp_reference_bf16_inputs(x2, w1, b1, w2, b2, activation="sigmoid")
    assert jnp.allclose(y2, y2_ref, atol=1e-3, rtol=1e-3), "sigmoid / padded-batch mismatch"

    print("KERNEL_OK")
</pallas_src>

<mosaic_0001>
module attributes {stable_mosaic.version = 11 : i64} {
  func.func @_mlp_kernel(%arg0: i32, %arg1: memref<48x128xf32, #tpu.memory_space<vmem>>, %arg2: memref<128x256xbf16, #tpu.memory_space<vmem>>, %arg3: memref<1x256xf32, #tpu.memory_space<vmem>>, %arg4: memref<256x128xbf16, #tpu.memory_space<vmem>>, %arg5: memref<1x128xf32, #tpu.memory_space<vmem>>, %arg6: memref<48x128xf32, #tpu.memory_space<vmem>>) attributes {dimension_semantics = [#tpu.dimension_semantics<parallel>], iteration_bounds = array<i64: 1>, scalar_prefetch = 0 : i64, scratch_operands = 0 : i64, tpu.core_type = #tpu.core_type<tc>, window_params = [{transform_indices = @transform_0, window_bounds = array<i64: 48, 128>}, {pipeline_mode = #tpu.pipeline_mode<synchronous>, transform_indices = @transform_1, window_bounds = array<i64: 128, 256>}, {pipeline_mode = #tpu.pipeline_mode<synchronous>, transform_indices = @transform_2, window_bounds = array<i64: 1, 256>}, {pipeline_mode = #tpu.pipeline_mode<synchronous>, transform_indices = @transform_3, window_bounds = array<i64: 256, 128>}, {pipeline_mode = #tpu.pipeline_mode<synchronous>, transform_indices = @transform_4, window_bounds = array<i64: 1, 128>}, {transform_indices = @transform_5, window_bounds = array<i64: 48, 128>}]} {
    %c0 = arith.constant 0 : index
    %c0_0 = arith.constant 0 : index
    %0 = vector.load %arg1[%c0, %c0_0] : memref<48x128xf32, #tpu.memory_space<vmem>>, vector<48x128xf32>
    %1 = arith.truncf %0 : vector<48x128xf32> to vector<48x128xbf16>
    %c0_1 = arith.constant 0 : index
    %c0_2 = arith.constant 0 : index
    %2 = vector.load %arg2[%c0_1, %c0_2] : memref<128x256xbf16, #tpu.memory_space<vmem>>, vector<128x256xbf16>
    %cst = arith.constant dense<0.000000e+00> : vector<48x256xf32>
    %3 = tpu.matmul %1, %2, %cst {dimension_numbers = #tpu.dot_dimension_numbers<[1], [0], [0], [1], [0, 0, 1, 1], [], []>} : vector<48x128xbf16>, vector<128x256xbf16>, vector<48x256xf32> -> vector<48x256xf32>
    %c0_3 = arith.constant 0 : index
    %c0_4 = arith.constant 0 : index
    %4 = vector.load %arg3[%c0_3, %c0_4] : memref<1x256xf32, #tpu.memory_space<vmem>>, vector<1x256xf32>
    %5 = vector.broadcast %4 : vector<1x256xf32> to vector<48x256xf32>
    %6 = arith.addf %3, %5 : vector<48x256xf32>
    %cst_5 = arith.constant 5.000000e-01 : f32
    %7 = vector.broadcast %cst_5 : f32 to vector<48x256xf32>
    %8 = arith.mulf %7, %6 : vector<48x256xf32>
    %cst_6 = arith.constant 0.707106769 : f32
    %9 = vector.broadcast %cst_6 : f32 to vector<48x256xf32>
    %10 = arith.mulf %6, %9 : vector<48x256xf32>
    %11 = math.erf %10 : vector<48x256xf32>
    %cst_7 = arith.constant 1.000000e+00 : f32
    %12 = vector.broadcast %cst_7 : f32 to vector<48x256xf32>
    %13 = arith.addf %12, %11 : vector<48x256xf32>
    %14 = arith.mulf %8, %13 : vector<48x256xf32>
    %15 = arith.truncf %14 : vector<48x256xf32> to vector<48x256xbf16>
    %c0_8 = arith.constant 0 : index
    %c0_9 = arith.constant 0 : index
    %16 = vector.load %arg4[%c0_8, %c0_9] : memref<256x128xbf16, #tpu.memory_space<vmem>>, vector<256x128xbf16>
    %cst_10 = arith.constant dense<0.000000e+00> : vector<48x128xf32>
    %17 = tpu.matmul %15, %16, %cst_10 {dimension_numbers = #tpu.dot_dimension_numbers<[1], [0], [0], [1], [0, 0, 1, 1], [], []>} : vector<48x256xbf16>, vector<256x128xbf16>, vector<48x128xf32> -> vector<48x128xf32>
    %c0_11 = arith.constant 0 : index
    %c0_12 = arith.constant 0 : index
    %18 = vector.load %arg5[%c0_11, %c0_12] : memref<1x128xf32, #tpu.memory_space<vmem>>, vector<1x128xf32>
    %19 = vector.broadcast %18 : vector<1x128xf32> to vector<48x128xf32>
    %20 = arith.addf %17, %19 : vector<48x128xf32>
    %c0_13 = arith.constant 0 : index
    %c0_14 = arith.constant 0 : index
    %21 = vector.load %arg6[%c0_13, %c0_14] : memref<48x128xf32, #tpu.memory_space<vmem>>, vector<48x128xf32>
    tpu.vector_store %arg6[%c0_13, %c0_14], %20 {strides = array<i32>} : memref<48x128xf32, #tpu.memory_space<vmem>>, vector<48x128xf32>,
    return
  }
  func.func @transform_0(%arg0: i32) -> (i32, i32) {
    %c0_i32 = arith.constant 0 : i32
    %c0_i32_0 = arith.constant 0 : i32
    return %arg0, %c0_i32 : i32, i32
  }
  func.func @transform_1(%arg0: i32) -> (i32, i32) {
    %c0_i32 = arith.constant 0 : i32
    %c0_i32_0 = arith.constant 0 : i32
    %c0_i32_1 = arith.constant 0 : i32
    return %c0_i32, %c0_i32_0 : i32, i32
  }
  func.func @transform_2(%arg0: i32) -> (i32, i32) {
    %c0_i32 = arith.constant 0 : i32
    %c0_i32_0 = arith.constant 0 : i32
    %c0_i32_1 = arith.constant 0 : i32
    return %c0_i32, %c0_i32_0 : i32, i32
  }
  func.func @transform_3(%arg0: i32) -> (i32, i32) {
    %c0_i32 = arith.constant 0 : i32
    %c0_i32_0 = arith.constant 0 : i32
    %c0_i32_1 = arith.constant 0 : i32
    return %c0_i32, %c0_i32_0 : i32, i32
  }
  func.func @transform_4(%arg0: i32) -> (i32, i32) {
    %c0_i32 = arith.constant 0 : i32
    %c0_i32_0 = arith.constant 0 : i32
    %c0_i32_1 = arith.constant 0 : i32
    return %c0_i32, %c0_i32_0 : i32, i32
  }
  func.func @transform_5(%arg0: i32) -> (i32, i32) {
    %c0_i32 = arith.constant 0 : i32
    %c0_i32_0 = arith.constant 0 : i32
    return %arg0, %c0_i32 : i32, i32
  }
}

</mosaic_0001>

<llo_original>
// kernel: tpu_custom_call.1
$region0: #{tpu_custom_call.1}
  #allocation0 [shape = 'u32[]', space=smem, size = 0x4, offset = 0x4, fixed_abs, tag = 'smem constant byte address 0x4 - core index']
  #allocation1 [shape = 'u32[144,128]{1,0:T(1,128)}', space=vmem, size = 0x12000, scoped, tag = 'internal scratch']
  %s0 = inlined_call_operand.hbm [shape: f32[48,128], index: 0, kind: input, shape index: {}]
  %s1 = inlined_call_operand.hbm [shape: bf16[128,256], index: 1, kind: input, shape index: {}]
  %s2 = inlined_call_operand.vmem [shape: f32[1,256], index: 2, kind: input, shape index: {}]
  %s3 = inlined_call_operand.hbm [shape: bf16[256,128], index: 3, kind: input, shape index: {}]
  %s4 = inlined_call_operand.vmem [shape: f32[1,128], index: 4, kind: input, shape index: {}]
  %s5 = inlined_call_operand.hbm [shape: f32[48,128], index: 5, kind: output, shape index: {}]
  %s6 = sld [smem:[#allocation0]]
  $region42: #{tpu_custom_call.1} parent=0
    _
  %s8 = ssub.s32 1, %s6
  %s9 = scalar_select 0, %s8, %s6
  $region1: #{tpu_custom_call.1} parent=0
    #allocation2 [shape = 'u8[24576]{0}', space=vmem, size = 0x6000, scoped, tag = 'input window, operand 0, single buffered']
    #allocation3 [shape = 's32[1]{0}', space=sflag, size = 0x4, scoped, tag = 'scoped memory for tpu_custom_call.1']
    #allocation4 [shape = 's32[1]{0}', space=sflag, size = 0x4, scoped, tag = 'scoped memory for tpu_custom_call.1']
    #allocation5 [shape = 'u8[65536]{0}', space=vmem, size = 0x10000, scoped, tag = 'input window, operand 1, single buffered']
    #allocation6 [shape = 's32[1]{0}', space=sflag, size = 0x4, scoped, tag = 'scoped memory for tpu_custom_call.1']
    #allocation7 [shape = 'u8[65536]{0}', space=vmem, size = 0x10000, scoped, tag = 'input window, operand 3, single buffered']
    #allocation8 [shape = 'u8[24576]{0}', space=vmem, size = 0x6000, scoped, tag = 'output window, operand 0, single buffered']
    %10 = vsyncpa [#allocation3], 0
    %11 = vsyncpa [#allocation6], 0
    %12 = vsyncpa [#allocation4], 0
    // Predicated region
    $region2: #{tpu_custom_call.1} parent=1 // pred_check
      _
    $region3: #{tpu_custom_call.1} parent=1 // pred_check_branch
      %14 = sbr.rel (0) target = $region5
    $region4: #{tpu_custom_call.1} parent=1 // pred_region
      %s16 = ssub.s32 768, 768
      %17 = vsyncadd [#allocation3], %s16
      %s18 = sshll.u32 [#allocation2], 4
      %s19 = int_to_ptr.vmem [resolvable:$true] %s18
      %24 = dma.hbm_to_vmem [thread:$0]  %s0, 768, %s19, [#allocation3], 128, 128, 8
    $region5: #{tpu_custom_call.1} parent=1 // pred_fallthru
      _
    // Predicated region
    $region6: #{tpu_custom_call.1} parent=1 // pred_check
      _
    $region7: #{tpu_custom_call.1} parent=1 // pred_check_branch
      %26 = sbr.rel (0) target = $region9
    $region8: #{tpu_custom_call.1} parent=1 // pred_region
      %s28 = ssub.s32 2048, 2048
      %29 = vsyncadd [#allocation6], %s28
      %s30 = sshll.u32 [#allocation5], 4
      %s31 = int_to_ptr.vmem [resolvable:$true] %s30
      %36 = dma.hbm_to_vmem [thread:$0]  %s1, 2048, %s31, [#allocation6], 128, 128, 8
    $region9: #{tpu_custom_call.1} parent=1 // pred_fallthru
      _
    // Predicated region
    $region10: #{tpu_custom_call.1} parent=1 // pred_check
      _
    $region11: #{tpu_custom_call.1} parent=1 // pred_check_branch
      %38 = sbr.rel (0) target = $region13
    $region12: #{tpu_custom_call.1} parent=1 // pred_region
      _
    $region13: #{tpu_custom_call.1} parent=1 // pred_fallthru
      _
    // Predicated region
    $region14: #{tpu_custom_call.1} parent=1 // pred_check
      _
    $region15: #{tpu_custom_call.1} parent=1 // pred_check_branch
      %40 = sbr.rel (0) target = $region17
    $region16: #{tpu_custom_call.1} parent=1 // pred_region
      %s42 = ssub.s32 2048, 2048
      %43 = vsyncadd [#allocation6], %s42
      %s44 = sshll.u32 [#allocation7], 4
      %s45 = int_to_ptr.vmem [resolvable:$true] %s44
      %50 = dma.hbm_to_vmem [thread:$0]  %s3, 2048, %s45, [#allocation6], 64, 64, 4
    $region17: #{tpu_custom_call.1} parent=1 // pred_fallthru
      _
    // Predicated region
    $region18: #{tpu_custom_call.1} parent=1 // pred_check
      _
    $region19: #{tpu_custom_call.1} parent=1 // pred_check_branch
      %52 = sbr.rel (0) target = $region21
    $region20: #{tpu_custom_call.1} parent=1 // pred_region
      _
    $region21: #{tpu_custom_call.1} parent=1 // pred_fallthru
      _
    // Predicated region
    $region22: #{tpu_custom_call.1} parent=1 // pred_check
      _
    $region23: #{tpu_custom_call.1} parent=1 // pred_check_branch
      %54 = sbr.rel (0) target = $region25
    $region24: #{tpu_custom_call.1} parent=1 // pred_region
      %55 = dma.done [#allocation3], 768
    $region25: #{tpu_custom_call.1} parent=1 // pred_fallthru
      _
    // Predicated region
    $region26: #{tpu_custom_call.1} parent=1 // pred_check
      _
    $region27: #{tpu_custom_call.1} parent=1 // pred_check_branch
      %57 = sbr.rel (0) target = $region29
    $region28: #{tpu_custom_call.1} parent=1 // pred_region
      %58 = dma.done [#allocation6], 2048
    $region29: #{tpu_custom_call.1} parent=1 // pred_fallthru
      _
    // Predicated region
    $region30: #{tpu_custom_call.1} parent=1 // pred_check
      _
    $region31: #{tpu_custom_call.1} parent=1 // pred_check_branch
      %60 = sbr.rel (0) target = $region33
    $region32: #{tpu_custom_call.1} parent=1 // pred_region
      %61 = dma.done [#allocation6], 2048
    $region33: #{tpu_custom_call.1} parent=1 // pred_fallthru
      _
    %v63 = vld [vmem:[#allocation2] sm:$0xff]
    %v64 = vld [vmem:[#allocation2 + $0x8] sm:$0xff]
    %v65 = vld [vmem:[#allocation2 + $0x10] sm:$0xff]
    %v66 = vld [vmem:[#allocation2 + $0x18] sm:$0xff]
    %v67 = vld [vmem:[#allocation2 + $0x20] sm:$0xff]
    %v68 = vld [vmem:[#allocation2 + $0x28] sm:$0xff]
    %v69 = vpack.c.bf16 %v64, %v63
    %v70 = vpack.c.bf16 %v66, %v65
    %v71 = vpack.c.bf16 %v68, %v67
    %v72 = vld [vmem:[#allocation5] sm:$0xff]
    %v73 = vld [vmem:[#allocation5 + $0x8] sm:$0xff]
    %v74 = vld [vmem:[#allocation5 + $0x10] sm:$0xff]
    %v75 = vld [vmem:[#allocation5 + $0x18] sm:$0xff]
    %v76 = vld [vmem:[#allocation5 + $0x20] sm:$0xff]
    %v77 = vld [vmem:[#allocation5 + $0x28] sm:$0xff]
    %v78 = vld [vmem:[#allocation5 + $0x30] sm:$0xff]
    %v79 = vld [vmem:[#allocation5 + $0x38] sm:$0xff]
    %v80 = vld [vmem:[#allocation5 + $0x40] sm:$0xff]
    %v81 = vld [vmem:[#allocation5 + $0x48] sm:$0xff]
    %v82 = vld [vmem:[#allocation5 + $0x50] sm:$0xff]
    %v83 = vld [vmem:[#allocation5 + $0x58] sm:$0xff]
    %v84 = vld [vmem:[#allocation5 + $0x60] sm:$0xff]
    %v85 = vld [vmem:[#allocation5 + $0x68] sm:$0xff]
    %v86 = vld [vmem:[#allocation5 + $0x70] sm:$0xff]
    %v87 = vld [vmem:[#allocation5 + $0x78] sm:$0xff]
    %v88 = vld [vmem:[%s2] sm:$0x3]
    %v90 = vlaneseq
    %v91 = vshrl.u32 %v90, 7
    %v92 = vsub.s32 0, %v91
    %v93 = vrot.slane %v88, %v92
    %v94 = vlaneseq
    %v95 = vshrl.u32 %v94, 7
    %v96 = vsub.s32 1, %v95
    %v97 = vrot.slane %v88, %v96
    %v116 = vunpack.c.l.b16 %v72
    %v117 = vunpack.c.h.b16 %v72
    %v118 = vunpack.c.l.b16 %v73
    %v119 = vunpack.c.h.b16 %v73
    %v120 = vunpack.c.l.b16 %v74
    %v121 = vunpack.c.h.b16 %v74
    %v122 = vunpack.c.l.b16 %v75
    %v123 = vunpack.c.h.b16 %v75
    %v124 = vunpack.c.l.b16 %v76
    %v125 = vunpack.c.h.b16 %v76
    %v126 = vunpack.c.l.b16 %v77
    %v127 = vunpack.c.h.b16 %v77
    %v128 = vunpack.c.l.b16 %v78
    %v129 = vunpack.c.h.b16 %v78
    %v130 = vunpack.c.l.b16 %v79
    %v131 = vunpack.c.h.b16 %v79
    %v132 = vunpack.c.l.b16 %v80
    %v133 = vunpack.c.h.b16 %v80
    %v134 = vunpack.c.l.b16 %v81
    %v135 = vunpack.c.h.b16 %v81
    %v136 = vunpack.c.l.b16 %v82
    %v137 = vunpack.c.h.b16 %v82
    %v138 = vunpack.c.l.b16 %v83
    %v139 = vunpack.c.h.b16 %v83
    %v140 = vunpack.c.l.b16 %v84
    %v141 = vunpack.c.h.b16 %v84
    %v142 = vunpack.c.l.b16 %v85
    %v143 = vunpack.c.h.b16 %v85
    %v144 = vunpack.c.l.b16 %v86
    %v145 = vunpack.c.h.b16 %v86
    %v146 = vunpack.c.l.b16 %v87
    %v147 = vunpack.c.h.b16 %v87
    %v148 = vpack.c.b16 %v118, %v116
    %v149 = vpack.c.b16 %v119, %v117
    %v150 = vpack.c.b16 %v122, %v120
    %v151 = vpack.c.b16 %v123, %v121
    %v152 = vpack.c.b16 %v126, %v124
    %v153 = vpack.c.b16 %v127, %v125
    %v154 = vpack.c.b16 %v130, %v128
    %v155 = vpack.c.b16 %v131, %v129
    %v156 = vpack.c.b16 %v134, %v132
    %v157 = vpack.c.b16 %v135, %v133
    %v158 = vpack.c.b16 %v138, %v136
    %v159 = vpack.c.b16 %v139, %v137
    %v160 = vpack.c.b16 %v142, %v140
    %v161 = vpack.c.b16 %v143, %v141
    %v162 = vpack.c.b16 %v146, %v144
    %v163 = vpack.c.b16 %v147, %v145
    %180 = vmatprep.subr.bf16.mxu0 %v149
    %181 = vmatpush1.bf16.msra.mxu0 %v148
    %182 = vmatprep.subr.bf16.mxu0 %v151
    %183 = vmatpush1.bf16.msra.mxu0 %v150
    %184 = vmatprep.subr.bf16.mxu0 %v153
    %185 = vmatpush1.bf16.msra.mxu0 %v152
    %186 = vmatprep.subr.bf16.mxu0 %v155
    %187 = vmatpush1.bf16.msra.mxu0 %v154
    %188 = vmatprep.subr.bf16.mxu0 %v157
    %189 = vmatpush1.bf16.msra.mxu0 %v156
    %190 = vmatprep.subr.bf16.mxu0 %v159
    %191 = vmatpush1.bf16.msra.mxu0 %v158
    %192 = vmatprep.subr.bf16.mxu0 %v161
    %193 = vmatpush1.bf16.msra.mxu0 %v160
    %194 = vmatprep.subr.bf16.mxu0 %v163
    %195 = vmatpush1.bf16.msra.mxu0 %v162
    %196 = vmatprep.subr.bf16.mxu0 0
    %197 = vmatpush1.bf16.msra.mxu0 0
    %198 = vmatprep.subr.bf16.mxu0 0
    %199 = vmatpush1.bf16.msra.mxu0 0
    %200 = vmatprep.subr.bf16.mxu0 0
    %201 = vmatpush1.bf16.msra.mxu0 0
    %202 = vmatprep.subr.bf16.mxu0 0
    %203 = vmatpush1.bf16.msra.mxu0 0
    %204 = vmatprep.subr.bf16.mxu0 0
    %205 = vmatpush1.bf16.msra.mxu0 0
    %206 = vmatprep.subr.bf16.mxu0 0
    %207 = vmatpush1.bf16.msra.mxu0 0
    %208 = vmatprep.subr.bf16.mxu0 0
    %209 = vmatpush1.bf16.msra.mxu0 0
    %210 = vmatprep.subr.bf16.mxu0 0
    %211 = vmatpush1.bf16.msra.mxu0 0
    %212 = vmatprep.mubr.bf16.mxu0 0
    %213 = vmatmul.mubr.bf16.gmra.mrb[0].mxu0 %v69
    %v214 = vpop.f32.mrb[0].mxu0
    %v215 = vadd.f32 %v93, %v214
    %v216 = vpop.f32.mrb[0].mxu0
    %v217 = vadd.f32 %v97, %v216
    %v218 = vpop.f32.mrb[0].mxu0
    %v219 = vadd.f32 %v93, %v218
    %v220 = vpop.f32.mrb[0].mxu0
    %v221 = vadd.f32 %v97, %v220
    %222 = vmatprep.mubr.bf16.mxu0 0
    %223 = vmatmul.mubr.bf16.gmra.mrb[0].mxu0 %v70
    %v224 = vpop.f32.mrb[0].mxu0
    %v225 = vadd.f32 %v93, %v224
    %v226 = vpop.f32.mrb[0].mxu0
    %v227 = vadd.f32 %v97, %v226
    %v228 = vpop.f32.mrb[0].mxu0
    %v229 = vadd.f32 %v93, %v228
    %v230 = vpop.f32.mrb[0].mxu0
    %v231 = vadd.f32 %v97, %v230
    %232 = vmatprep.mubr.bf16.mxu0 0
    %233 = vmatmul.mubr.bf16.gmra.mrb[0].mxu0 %v71
    %v234 = vpop.f32.mrb[0].mxu0
    %v235 = vadd.f32 %v93, %v234
    %v236 = vpop.f32.mrb[0].mxu0
    %v237 = vadd.f32 %v97, %v236
    %v238 = vpop.f32.mrb[0].mxu0
    %v239 = vadd.f32 %v93, %v238
    %v240 = vpop.f32.mrb[0].mxu0
    %v241 = vadd.f32 %v97, %v240
    %242 = vdwg.mxu0
    %v243 = vmul.f32 %v215, 0.5
    %v244 = vmul.f32 %v217, 0.5
    %v245 = vmul.f32 %v219, 0.5
    %v246 = vmul.f32 %v221, 0.5
    %v247 = vmul.f32 %v225, 0.5
    %v248 = vmul.f32 %v227, 0.5
    %v249 = vmul.f32 %v229, 0.5
    %v250 = vmul.f32 %v231, 0.5
    %v251 = vmul.f32 %v235, 0.5
    %v252 = vmul.f32 %v237, 0.5
    %v253 = vmul.f32 %v239, 0.5
    %v254 = vmul.f32 %v241, 0.5
    %v255 = vmul.f32 %v215, 0.70710677
    %v256 = vmul.f32 %v217, 0.70710677
    %v257 = vmul.f32 %v219, 0.70710677
    %v258 = vmul.f32 %v221, 0.70710677
    %v259 = vmul.f32 %v225, 0.70710677
    %v260 = vmul.f32 %v227, 0.70710677
    %v261 = vmul.f32 %v229, 0.70710677
    %v262 = vmul.f32 %v231, 0.70710677
    %v263 = vmul.f32 %v235, 0.70710677
    %v264 = vmul.f32 %v237, 0.70710677
    %v265 = vmul.f32 %v239, 0.70710677
    %v266 = vmul.f32 %v241, 0.70710677
    %v267 = verf.f32.pop %v255
    %v268 = verf.f32.pop %v256
    %v269 = verf.f32.pop %v257
    %v270 = verf.f32.pop %v258
    %v271 = verf.f32.pop %v259
    %v272 = verf.f32.pop %v260
    %v273 = verf.f32.pop %v261
    %v274 = verf.f32.pop %v262
    %v275 = verf.f32.pop %v263
    %v276 = verf.f32.pop %v264
    %v277 = verf.f32.pop %v265
    %v278 = verf.f32.pop %v266
    %v279 = vadd.f32 %v267, 1.0
    %v280 = vadd.f32 %v268, 1.0
    %v281 = vadd.f32 %v269, 1.0
    %v282 = vadd.f32 %v270, 1.0
    %v283 = vadd.f32 %v271, 1.0
    %v284 = vadd.f32 %v272, 1.0
    %v285 = vadd.f32 %v273, 1.0
    %v286 = vadd.f32 %v274, 1.0
    %v287 = vadd.f32 %v275, 1.0
    %v288 = vadd.f32 %v276, 1.0
    %v289 = vadd.f32 %v277, 1.0
    %v290 = vadd.f32 %v278, 1.0
    %v291 = vmul.f32 %v243, %v279
    %v292 = vmul.f32 %v244, %v280
    %v293 = vmul.f32 %v245, %v281
    %v294 = vmul.f32 %v246, %v282
    %v295 = vmul.f32 %v247, %v283
    %v296 = vmul.f32 %v248, %v284
    %v297 = vmul.f32 %v249, %v285
    %v298 = vmul.f32 %v250, %v286
    %v299 = vmul.f32 %v251, %v287
    %v300 = vmul.f32 %v252, %v288
    %v301 = vmul.f32 %v253, %v289
    %v302 = vmul.f32 %v254, %v290
    %v303 = vpack.c.bf16 %v293, %v291
    %v304 = vpack.c.bf16 %v294, %v292
    %v305 = vpack.c.bf16 %v297, %v295
    %v306 = vpack.c.bf16 %v298, %v296
    %v307 = vpack.c.bf16 %v301, %v299
    %v308 = vpack.c.bf16 %v302, %v300
    %v309 = vld [vmem:[#allocation7] sm:$0xf]
    %v310 = vld [vmem:[#allocation7 + $0x4] sm:$0xf]
    %v311 = vld [vmem:[#allocation7 + $0x8] sm:$0xf]
    %v312 = vld [vmem:[#allocation7 + $0xc] sm:$0xf]
    %v313 = vld [vmem:[#allocation7 + $0x10] sm:$0xf]
    %v314 = vld [vmem:[#allocation7 + $0x14] sm:$0xf]
    %v315 = vld [vmem:[#allocation7 + $0x18] sm:$0xf]
    %v316 = vld [vmem:[#allocation7 + $0x1c] sm:$0xf]
    %v317 = vld [vmem:[#allocation7 + $0x20] sm:$0xf]
    %v318 = vld [vmem:[#allocation7 + $0x24] sm:$0xf]
    %v319 = vld [vmem:[#allocation7 + $0x28] sm:$0xf]
    %v320 = vld [vmem:[#allocation7 + $0x2c] sm:$0xf]
    %v321 = vld [vmem:[#allocation7 + $0x30] sm:$0xf]
    %v322 = vld [vmem:[#allocation7 + $0x34] sm:$0xf]
    %v323 = vld [vmem:[#allocation7 + $0x38] sm:$0xf]
    %v324 = vld [vmem:[#allocation7 + $0x3c] sm:$0xf]
    %v325 = vld [vmem:[#allocation7 + $0x40] sm:$0xf]
    %v326 = vld [vmem:[#allocation7 + $0x44] sm:$0xf]
    %v327 = vld [vmem:[#allocation7 + $0x48] sm:$0xf]
    %v328 = vld [vmem:[#allocation7 + $0x4c] sm:$0xf]
    %v329 = vld [vmem:[#allocation7 + $0x50] sm:$0xf]
    %v330 = vld [vmem:[#allocation7 + $0x54] sm:$0xf]
    %v331 = vld [vmem:[#allocation7 + $0x58] sm:$0xf]
    %v332 = vld [vmem:[#allocation7 + $0x5c] sm:$0xf]
    %v333 = vld [vmem:[#allocation7 + $0x60] sm:$0xf]
    %v334 = vld [vmem:[#allocation7 + $0x64] sm:$0xf]
    %v335 = vld [vmem:[#allocation7 + $0x68] sm:$0xf]
    %v336 = vld [vmem:[#allocation7 + $0x6c] sm:$0xf]
    %v337 = vld [vmem:[#allocation7 + $0x70] sm:$0xf]
    %v338 = vld [vmem:[#allocation7 + $0x74] sm:$0xf]
    %v339 = vld [vmem:[#allocation7 + $0x78] sm:$0xf]
    %v340 = vld [vmem:[#allocation7 + $0x7c] sm:$0xf]
    %v341 = vld [vmem:[%s4] sm:$0x1]
    %v343 = vlaneseq
    %v344 = vshrl.u32 %v343, 7
    %v345 = vsub.s32 0, %v344
    %v346 = vrot.slane %v341, %v345
    %v380 = vunpack.c.l.b16 %v309
    %v381 = vunpack.c.l.b16 %v310
    %v382 = vunpack.c.l.b16 %v311
    %v383 = vunpack.c.l.b16 %v312
    %v384 = vunpack.c.l.b16 %v313
    %v385 = vunpack.c.l.b16 %v314
    %v386 = vunpack.c.l.b16 %v315
    %v387 = vunpack.c.l.b16 %v316
    %v388 = vunpack.c.l.b16 %v317
    %v389 = vunpack.c.l.b16 %v318
    %v390 = vunpack.c.l.b16 %v319
    %v391 = vunpack.c.l.b16 %v320
    %v392 = vunpack.c.l.b16 %v321
    %v393 = vunpack.c.l.b16 %v322
    %v394 = vunpack.c.l.b16 %v323
    %v395 = vunpack.c.l.b16 %v324
    %v396 = vunpack.c.l.b16 %v325
    %v397 = vunpack.c.l.b16 %v326
    %v398 = vunpack.c.l.b16 %v327
    %v399 = vunpack.c.l.b16 %v328
    %v400 = vunpack.c.l.b16 %v329
    %v401 = vunpack.c.l.b16 %v330
    %v402 = vunpack.c.l.b16 %v331
    %v403 = vunpack.c.l.b16 %v332
    %v404 = vunpack.c.l.b16 %v333
    %v405 = vunpack.c.l.b16 %v334
    %v406 = vunpack.c.l.b16 %v335
    %v407 = vunpack.c.l.b16 %v336
    %v408 = vunpack.c.l.b16 %v337
    %v409 = vunpack.c.l.b16 %v338
    %v410 = vunpack.c.l.b16 %v339
    %v411 = vunpack.c.l.b16 %v340
    %v412 = vpack.c.b16 %v381, %v380
    %v413 = vpack.c.b16 %v383, %v382
    %v414 = vpack.c.b16 %v385, %v384
    %v415 = vpack.c.b16 %v387, %v386
    %v416 = vpack.c.b16 %v389, %v388
    %v417 = vpack.c.b16 %v391, %v390
    %v418 = vpack.c.b16 %v393, %v392
    %v419 = vpack.c.b16 %v395, %v394
    %v420 = vpack.c.b16 %v397, %v396
    %v421 = vpack.c.b16 %v399, %v398
    %v422 = vpack.c.b16 %v401, %v400
    %v423 = vpack.c.b16 %v403, %v402
    %v424 = vpack.c.b16 %v405, %v404
    %v425 = vpack.c.b16 %v407, %v406
    %v426 = vpack.c.b16 %v409, %v408
    %v427 = vpack.c.b16 %v411, %v410
    %444 = vmatprep.subr.bf16.mxu0 0
    %445 = vmatpush1.bf16.msra.mxu0 %v412
    %446 = vmatprep.subr.bf16.mxu0 0
    %447 = vmatpush1.bf16.msra.mxu0 %v413
    %448 = vmatprep.subr.bf16.mxu0 0
    %449 = vmatpush1.bf16.msra.mxu0 %v414
    %450 = vmatprep.subr.bf16.mxu0 0
    %451 = vmatpush1.bf16.msra.mxu0 %v415
    %452 = vmatprep.subr.bf16.mxu0 0
    %453 = vmatpush1.bf16.msra.mxu0 %v416
    %454 = vmatprep.subr.bf16.mxu0 0
    %455 = vmatpush1.bf16.msra.mxu0 %v417
    %456 = vmatprep.subr.bf16.mxu0 0
    %457 = vmatpush1.bf16.msra.mxu0 %v418
    %458 = vmatprep.subr.bf16.mxu0 0
    %459 = vmatpush1.bf16.msra.mxu0 %v419
    %460 = vmatprep.subr.bf16.mxu0 0
    %461 = vmatpush1.bf16.msra.mxu0 %v420
    %462 = vmatprep.subr.bf16.mxu0 0
    %463 = vmatpush1.bf16.msra.mxu0 %v421
    %464 = vmatprep.subr.bf16.mxu0 0
    %465 = vmatpush1.bf16.msra.mxu0 %v422
    %466 = vmatprep.subr.bf16.mxu0 0
    %467 = vmatpush1.bf16.msra.mxu0 %v423
    %468 = vmatprep.subr.bf16.mxu0 0
    %469 = vmatpush1.bf16.msra.mxu0 %v424
    %470 = vmatprep.subr.bf16.mxu0 0
    %471 = vmatpush1.bf16.msra.mxu0 %v425
    %472 = vmatprep.subr.bf16.mxu0 0
    %473 = vmatpush1.bf16.msra.mxu0 %v426
    %474 = vmatprep.subr.bf16.mxu0 0
    %475 = vmatpush1.bf16.msra.mxu0 %v427
    %476 = vmatprep.mubr.bf16.mxu0 %v304
    %477 = vmatmul.mubr.bf16.gmra.mrb[0].mxu0 %v303
    %v478 = vpop.f32.mrb[0].mxu0
    %v479 = vadd.f32 %v346, %v478
    %v480 = vpop.f32.mrb[0].mxu0
    %v481 = vpop.f32.mrb[0].mxu0
    %v482 = vadd.f32 %v346, %v481
    %v483 = vpop.f32.mrb[0].mxu0
    %484 = vmatprep.mubr.bf16.mxu0 %v306
    %485 = vmatmul.mubr.bf16.gmra.mrb[0].mxu0 %v305
    %v486 = vpop.f32.mrb[0].mxu0
    %v487 = vadd.f32 %v346, %v486
    %v488 = vpop.f32.mrb[0].mxu0
    %v489 = vpop.f32.mrb[0].mxu0
    %v490 = vadd.f32 %v346, %v489
    %v491 = vpop.f32.mrb[0].mxu0
    %492 = vmatprep.mubr.bf16.mxu0 %v308
    %493 = vmatmul.mubr.bf16.gmra.mrb[0].mxu0 %v307
    %v494 = vpop.f32.mrb[0].mxu0
    %v495 = vadd.f32 %v346, %v494
    %v496 = vpop.f32.mrb[0].mxu0
    %v497 = vpop.f32.mrb[0].mxu0
    %v498 = vadd.f32 %v346, %v497
    %v499 = vpop.f32.mrb[0].mxu0
    %500 = vdwg.mxu0
    %501 = vst [vmem:[#allocation8] sm:$0xff] %v479
    %502 = vst [vmem:[#allocation8 + $0x8] sm:$0xff] %v482
    %503 = vst [vmem:[#allocation8 + $0x10] sm:$0xff] %v487
    %504 = vst [vmem:[#allocation8 + $0x18] sm:$0xff] %v490
    %505 = vst [vmem:[#allocation8 + $0x20] sm:$0xff] %v495
    %506 = vst [vmem:[#allocation8 + $0x28] sm:$0xff] %v498
    // Predicated region
    $region34: #{tpu_custom_call.1} parent=1 // pred_check
      _
    $region35: #{tpu_custom_call.1} parent=1 // pred_check_branch
      %508 = sbr.rel (0) target = $region37
    $region36: #{tpu_custom_call.1} parent=1 // pred_region
      %s510 = ssub.s32 768, 768
      %511 = vsyncadd [#allocation4], %s510
      %s512 = sshll.u32 [#allocation8], 4
      %s513 = int_to_ptr.vmem [resolvable:$true] %s512
      %518 = dma.vmem_to_hbm [thread:$0]  %s513, 768, %s5, [#allocation4], 128, 128, 8
    $region37: #{tpu_custom_call.1} parent=1 // pred_fallthru
      _
    // Predicated region
    $region38: #{tpu_custom_call.1} parent=1 // pred_check
      _
    $region39: #{tpu_custom_call.1} parent=1 // pred_check_branch
      %520 = sbr.rel (0) target = $region41
    $region40: #{tpu_custom_call.1} parent=1 // pred_region
      %521 = dma.done [#allocation4], 768
    $region41: #{tpu_custom_call.1} parent=1 // pred_fallthru
      _
    %522 = vsyncpa [#allocation3], 1
    %523 = vsyncpa [#allocation6], 1
    %524 = vsyncpa [#allocation4], 1

</llo_original>
